<compile_context>
chip_gen: v7x
topology: tpu7x:2x2x1
jax: 0.10.0
libtpu: 0.0.40
codegen_flags: <defaults>
</compile_context>

<pallas_src>
import functools

import jax
import jax.numpy as jnp
from jax.experimental import pallas as pl
from jax.experimental.pallas import tpu as pltpu


def _se_kernel(x_ref, w1t_ref, b1_ref, w2t_ref, b2_ref, o_ref, *,
               channels_on_lanes):
    # channels_on_lanes=False: x_ref/o_ref are (TB, c, hw)  (spatial on lanes)
    # channels_on_lanes=True : x_ref/o_ref are (TB, hw, c)  (channels on lanes)
    # w1t_ref: (c, mid)  b1_ref: (1, mid)  w2t_ref: (mid, c)  b2_ref: (1, c)
    hw_axis = 1 if channels_on_lanes else 2
    inv_hw = 1.0 / x_ref.shape[hw_axis]

    # AvgPool2d(kernel_size=H, stride=1) over the full spatial extent ==
    # global mean over H*W. Accumulate in f32; x is not kept live afterwards.
    pooled = jnp.sum(x_ref[...], axis=hw_axis, dtype=jnp.float32) * inv_hw  # (TB, c)

    # Linear(in_channels -> mid) + ReLU6, batched over the TB rows.
    h1 = jnp.dot(pooled, w1t_ref[...], preferred_element_type=jnp.float32)
    h1 = jnp.clip(h1 + b1_ref[...], 0.0, 6.0)

    # Linear(mid -> out_channels) + HardSwish: y * relu6(y + 3) / 6
    h2 = jnp.dot(h1, w2t_ref[...], preferred_element_type=jnp.float32)
    h2 = h2 + b2_ref[...]
    scale = h2 * jnp.clip(h2 + 3.0, 0.0, 6.0) * (1.0 / 6.0)  # (TB, c) f32

    if channels_on_lanes:
        scale_b = scale[:, None, :]   # broadcast over hw (sublane axis)
    else:
        scale_b = scale[:, :, None]   # broadcast over hw (lane axis)

    # Channel-wise rescale (out.view(b, c, 1, 1) * x). Re-read x from VMEM
    # (cheap: 3 vld slots/cycle), multiply in f32, downcast once at the store.
    o_ref[...] = (x_ref[...].astype(jnp.float32) * scale_b).astype(o_ref.dtype)


def prepare_se_params(w1, b1, w2, b2):
    """One-time init: PyTorch Linear weights (out, in) -> (in, out) + 2-D biases."""
    return (jnp.transpose(w1), b1.reshape(1, -1),
            jnp.transpose(w2), b2.reshape(1, -1))


def _choose_tb(b, row_bytes):
    """Batch rows per grid step: ~1 MiB DMA blocks, v7x-safe VMEM, >=2 steps."""
    target_bytes = 1 << 20            # ~1 MiB per buffer per step
    vmem_cap = 24 << 20               # double-buffered in+out budget (v7x 64 MiB)
    tb = max(1, min(b, target_bytes // max(row_bytes, 1)))
    tb = min(tb, max(1, vmem_cap // (4 * max(row_bytes, 1))))
    if b >= 2:
        tb = min(tb, max(1, b // 2))  # keep >= 2 parallel steps (v7x has 2 TCs)
    while b % tb:                     # make every block full-sized
        tb -= 1
    return tb


def squeeze_and_excite(x, w1t, b1r, w2t, b2r):
    """x: (b, c, h, w) NCHW. Params already prepared by prepare_se_params."""
    b, c, h, w = x.shape
    mid = w1t.shape[1]
    assert w1t.shape == (c, mid), "in_channels mismatch"
    assert w2t.shape == (mid, c), "module requires out_channels == in_channels"
    hw = h * w

    # Layout switch: keep spatial on the 128-lane axis when it is lane-dense;
    # otherwise put channels on lanes (small-HW / large-C SE configs).
    channels_on_lanes = hw < 128
    if channels_on_lanes:
        x2 = jnp.transpose(x.reshape(b, c, hw), (0, 2, 1))   # (b, hw, c)
        row_shape = (hw, c)
    else:
        x2 = x.reshape(b, c, hw)                             # (b, c, hw)
        row_shape = (c, hw)

    row_bytes = c * hw * x.dtype.itemsize
    tb = _choose_tb(b, row_bytes)
    grid = (b // tb,)
    blk = (tb,) + row_shape

    # Scoped-VMEM budget: double-buffered in+out, resident weights, headroom.
    # Raised above v5e's 16 MiB default; capped well under v7x's 64 MiB.
    vmem_needed = 4 * tb * row_bytes + 8 * (c * mid + mid + c) * 4 + (2 << 20)
    vmem_limit = int(min(max(vmem_needed, 8 << 20), 48 << 20))

    kernel = functools.partial(_se_kernel, channels_on_lanes=channels_on_lanes)

    out = pl.pallas_call(
        kernel,
        out_shape=jax.ShapeDtypeStruct((b,) + row_shape, x.dtype),
        grid=grid,
        in_specs=[
            pl.BlockSpec(blk, lambda i: (i, 0, 0)),
            pl.BlockSpec((c, mid), lambda i: (0, 0)),
            pl.BlockSpec((1, mid), lambda i: (0, 0)),
            pl.BlockSpec((mid, c), lambda i: (0, 0)),
            pl.BlockSpec((1, c), lambda i: (0, 0)),
        ],
        out_specs=pl.BlockSpec(blk, lambda i: (i, 0, 0)),
        compiler_params=pltpu.CompilerParams(
            dimension_semantics=("parallel",),
            vmem_limit_bytes=vmem_limit),
    )(x2, w1t, b1r, w2t, b2r)

    if channels_on_lanes:
        out = jnp.transpose(out, (0, 2, 1))
    # TODO(synk): if a single batch row ever exceeds the per-step VMEM budget
    # (huge C*H*W), add a two-phase spatial-tiled reduction + rescale.
    return out.reshape(b, c, h, w)


def _reference(x, w1, b1, w2, b2):
    pooled = jnp.mean(x, axis=(2, 3))
    h1 = jnp.clip(pooled @ w1.T + b1, 0.0, 6.0)
    h2 = h1 @ w2.T + b2
    scale = h2 * jnp.clip(h2 + 3.0, 0.0, 6.0) / 6.0
    return x * scale[:, :, None, None]


if __name__ == "__main__":
    # Module config: SqueezeAndExcite(in_channels=32, out_channels=32,
    #                                 se_kernel_size=16, divide=4)
    B, C, H, W = 4, 32, 16, 16
    MID = C // 4

    key = jax.random.PRNGKey(0)
    kx, k1, k2, k3, k4 = jax.random.split(key, 5)
    x = jax.random.normal(kx, (B, C, H, W), dtype=jnp.float32)
    # Deterministic synthetic Linear params (PyTorch Linear shapes: (out, in)).
    w1 = jax.random.normal(k1, (MID, C), dtype=jnp.float32) * 0.1
    b1 = jax.random.normal(k2, (MID,), dtype=jnp.float32) * 0.1
    w2 = jax.random.normal(k3, (C, MID), dtype=jnp.float32) * 0.1
    b2 = jax.random.normal(k4, (C,), dtype=jnp.float32) * 0.1

    params = prepare_se_params(w1, b1, w2, b2)   # one-time, outside the hot path
    out = squeeze_and_excite(x, *params)
    out = jax.block_until_ready(out)

    ref = _reference(x, w1, b1, w2, b2)
    assert out.shape == (B, C, H, W)
    assert jnp.allclose(out, ref, atol=1e-5, rtol=1e-5), "mismatch vs reference"
    print("KERNEL_OK")
</pallas_src>

<mosaic_0001>
module attributes {stable_mosaic.version = 11 : i64} {
  func.func @_se_kernel(%arg0: i32, %arg1: memref<2x32x256xf32, #tpu.memory_space<vmem>>, %arg2: memref<32x8xf32, #tpu.memory_space<vmem>>, %arg3: memref<1x8xf32, #tpu.memory_space<vmem>>, %arg4: memref<8x32xf32, #tpu.memory_space<vmem>>, %arg5: memref<1x32xf32, #tpu.memory_space<vmem>>, %arg6: memref<2x32x256xf32, #tpu.memory_space<vmem>>) attributes {dimension_semantics = [#tpu.dimension_semantics<parallel>], iteration_bounds = array<i64: 2>, scalar_prefetch = 0 : i64, scratch_operands = 0 : i64, tpu.core_type = #tpu.core_type<tc>, window_params = [{transform_indices = @transform_0, window_bounds = array<i64: 2, 32, 256>}, {pipeline_mode = #tpu.pipeline_mode<synchronous>, transform_indices = @transform_1, window_bounds = array<i64: 32, 8>}, {pipeline_mode = #tpu.pipeline_mode<synchronous>, transform_indices = @transform_2, window_bounds = array<i64: 1, 8>}, {pipeline_mode = #tpu.pipeline_mode<synchronous>, transform_indices = @transform_3, window_bounds = array<i64: 8, 32>}, {pipeline_mode = #tpu.pipeline_mode<synchronous>, transform_indices = @transform_4, window_bounds = array<i64: 1, 32>}, {transform_indices = @transform_5, window_bounds = array<i64: 2, 32, 256>}]} {
    %c0 = arith.constant 0 : index
    %c0_0 = arith.constant 0 : index
    %c0_1 = arith.constant 0 : index
    %0 = vector.load %arg1[%c0, %c0_0, %c0_1] : memref<2x32x256xf32, #tpu.memory_space<vmem>>, vector<2x32x256xf32>
    %cst = arith.constant dense<0.000000e+00> : vector<2x32xf32>
    %1 = vector.multi_reduction <add>, %0, %cst [2] : vector<2x32x256xf32> to vector<2x32xf32>
    %cst_2 = arith.constant 3.906250e-03 : f32
    %2 = vector.broadcast %cst_2 : f32 to vector<2x32xf32>
    %3 = arith.mulf %1, %2 : vector<2x32xf32>
    %c0_3 = arith.constant 0 : index
    %c0_4 = arith.constant 0 : index
    %4 = vector.load %arg2[%c0_3, %c0_4] : memref<32x8xf32, #tpu.memory_space<vmem>>, vector<32x8xf32>
    %cst_5 = arith.constant dense<0.000000e+00> : vector<2x8xf32>
    %5 = tpu.matmul %3, %4, %cst_5 {dimension_numbers = #tpu.dot_dimension_numbers<[1], [0], [0], [1], [0, 0, 1, 1], [], []>} : vector<2x32xf32>, vector<32x8xf32>, vector<2x8xf32> -> vector<2x8xf32>
    %c0_6 = arith.constant 0 : index
    %c0_7 = arith.constant 0 : index
    %6 = vector.load %arg3[%c0_6, %c0_7] : memref<1x8xf32, #tpu.memory_space<vmem>>, vector<1x8xf32>
    %7 = vector.broadcast %6 : vector<1x8xf32> to vector<2x8xf32>
    %8 = arith.addf %5, %7 : vector<2x8xf32>
    %cst_8 = arith.constant 0.000000e+00 : f32
    %cst_9 = arith.constant 6.000000e+00 : f32
    %9 = vector.broadcast %cst_8 : f32 to vector<2x8xf32>
    %10 = arith.maximumf %9, %8 : vector<2x8xf32>
    %11 = vector.broadcast %cst_9 : f32 to vector<2x8xf32>
    %12 = arith.minimumf %11, %10 : vector<2x8xf32>
    %c0_10 = arith.constant 0 : index
    %c0_11 = arith.constant 0 : index
    %13 = vector.load %arg4[%c0_10, %c0_11] : memref<8x32xf32, #tpu.memory_space<vmem>>, vector<8x32xf32>
    %cst_12 = arith.constant dense<0.000000e+00> : vector<2x32xf32>
    %14 = tpu.matmul %12, %13, %cst_12 {dimension_numbers = #tpu.dot_dimension_numbers<[1], [0], [0], [1], [0, 0, 1, 1], [], []>} : vector<2x8xf32>, vector<8x32xf32>, vector<2x32xf32> -> vector<2x32xf32>
    %c0_13 = arith.constant 0 : index
    %c0_14 = arith.constant 0 : index
    %15 = vector.load %arg5[%c0_13, %c0_14] : memref<1x32xf32, #tpu.memory_space<vmem>>, vector<1x32xf32>
    %16 = vector.broadcast %15 : vector<1x32xf32> to vector<2x32xf32>
    %17 = arith.addf %14, %16 : vector<2x32xf32>
    %cst_15 = arith.constant 3.000000e+00 : f32
    %18 = vector.broadcast %cst_15 : f32 to vector<2x32xf32>
    %19 = arith.addf %17, %18 : vector<2x32xf32>
    %cst_16 = arith.constant 0.000000e+00 : f32
    %cst_17 = arith.constant 6.000000e+00 : f32
    %20 = vector.broadcast %cst_16 : f32 to vector<2x32xf32>
    %21 = arith.maximumf %20, %19 : vector<2x32xf32>
    %22 = vector.broadcast %cst_17 : f32 to vector<2x32xf32>
    %23 = arith.minimumf %22, %21 : vector<2x32xf32>
    %24 = arith.mulf %17, %23 : vector<2x32xf32>
    %cst_18 = arith.constant 0.166666672 : f32
    %25 = vector.broadcast %cst_18 : f32 to vector<2x32xf32>
    %26 = arith.mulf %24, %25 : vector<2x32xf32>
    %27 = vector.shape_cast %26 : vector<2x32xf32> to vector<2x32x1xf32>
    %c0_19 = arith.constant 0 : index
    %c0_20 = arith.constant 0 : index
    %c0_21 = arith.constant 0 : index
    %28 = vector.load %arg1[%c0_19, %c0_20, %c0_21] : memref<2x32x256xf32, #tpu.memory_space<vmem>>, vector<2x32x256xf32>
    %29 = vector.broadcast %27 : vector<2x32x1xf32> to vector<2x32x256xf32>
    %30 = arith.mulf %28, %29 : vector<2x32x256xf32>
    %c0_22 = arith.constant 0 : index
    %c0_23 = arith.constant 0 : index
    %c0_24 = arith.constant 0 : index
    %31 = vector.load %arg6[%c0_22, %c0_23, %c0_24] : memref<2x32x256xf32, #tpu.memory_space<vmem>>, vector<2x32x256xf32>
    tpu.vector_store %arg6[%c0_22, %c0_23, %c0_24], %30 {strides = array<i32>} : memref<2x32x256xf32, #tpu.memory_space<vmem>>, vector<2x32x256xf32>,
    return
  }
  func.func @transform_0(%arg0: i32) -> (i32, i32, i32) {
    %c0_i32 = arith.constant 0 : i32
    %c0_i32_0 = arith.constant 0 : i32
    %c0_i32_1 = arith.constant 0 : i32
    return %arg0, %c0_i32, %c0_i32_0 : i32, i32, i32
  }
  func.func @transform_1(%arg0: i32) -> (i32, i32) {
    %c0_i32 = arith.constant 0 : i32
    %c0_i32_0 = arith.constant 0 : i32
    %c0_i32_1 = arith.constant 0 : i32
    return %c0_i32, %c0_i32_0 : i32, i32
  }
  func.func @transform_2(%arg0: i32) -> (i32, i32) {
    %c0_i32 = arith.constant 0 : i32
    %c0_i32_0 = arith.constant 0 : i32
    %c0_i32_1 = arith.constant 0 : i32
    return %c0_i32, %c0_i32_0 : i32, i32
  }
  func.func @transform_3(%arg0: i32) -> (i32, i32) {
    %c0_i32 = arith.constant 0 : i32
    %c0_i32_0 = arith.constant 0 : i32
    %c0_i32_1 = arith.constant 0 : i32
    return %c0_i32, %c0_i32_0 : i32, i32
  }
  func.func @transform_4(%arg0: i32) -> (i32, i32) {
    %c0_i32 = arith.constant 0 : i32
    %c0_i32_0 = arith.constant 0 : i32
    %c0_i32_1 = arith.constant 0 : i32
    return %c0_i32, %c0_i32_0 : i32, i32
  }
  func.func @transform_5(%arg0: i32) -> (i32, i32, i32) {
    %c0_i32 = arith.constant 0 : i32
    %c0_i32_0 = arith.constant 0 : i32
    %c0_i32_1 = arith.constant 0 : i32
    return %arg0, %c0_i32, %c0_i32_0 : i32, i32, i32
  }
}

</mosaic_0001>

<llo_original>
// kernel: tpu_custom_call.1
$region0: #{tpu_custom_call.1}
  #allocation0 [shape = 'u32[]', space=smem, size = 0x4, offset = 0x4, fixed_abs, tag = 'smem constant byte address 0x4 - core index']
  #allocation1 [shape = 'u32[144,128]{1,0:T(1,128)}', space=vmem, size = 0x12000, scoped, tag = 'internal scratch']
  %s0 = inlined_call_operand.hbm [shape: f32[4,32,256], index: 0, kind: input, shape index: {}]
  %s1 = inlined_call_operand.vmem [shape: f32[32,8], index: 1, kind: input, shape index: {}]
  %s2 = inlined_call_operand.vmem [shape: f32[1,8], index: 2, kind: input, shape index: {}]
  %s3 = inlined_call_operand.vmem [shape: f32[8,32], index: 3, kind: input, shape index: {}]
  %s4 = inlined_call_operand.vmem [shape: f32[1,32], index: 4, kind: input, shape index: {}]
  %s5 = inlined_call_operand.hbm [shape: f32[4,32,256], index: 5, kind: output, shape index: {}]
  %s6 = sld [smem:[#allocation0]]
  $region57: #{tpu_custom_call.1} parent=0
    _
  %s8 = ssub.s32 1, %s6
  %s9 = scalar_select 0, %s8, %s6
  $region1: #{tpu_custom_call.1} parent=0
    #allocation2 [shape = 'u8[131072]{0}', space=vmem, size = 0x20000, scoped, tag = 'input window, operand 0']
    #allocation3 [shape = 's32[2]{0}', space=sflag, size = 0x8, scoped, tag = 'scoped memory for tpu_custom_call.1']
    #allocation4 [shape = 's32[2]{0}', space=sflag, size = 0x8, scoped, tag = 'scoped memory for tpu_custom_call.1']
    #allocation5 [shape = 'u8[131072]{0}', space=vmem, size = 0x20000, scoped, tag = 'output window, operand 0']
    %10 = vsyncpa [#allocation3], 0
    %s11 = scalar_lea.sflag [#allocation3], 1
    %12 = vsyncpa %s11, 0
    %13 = vsyncpa [#allocation4], 0
    %s14 = scalar_lea.sflag [#allocation4], 1
    %15 = vsyncpa %s14, 0
    loop: start=0, step=1, limit=4
    $region2: #{tpu_custom_call.1} parent=1 // loop_pre_header
      _
    $region3: #{tpu_custom_call.1} parent=1 // loop_header
      %s17 = sphi 0, %s21
      %p18 = scmp.ge.s32.totalorder %s17, 4
      %s27 = sphi 0, %s29
      %s30 = sphi 0, %s27
      %s31 = sphi 0, %s30
      %s47 = sphi 0, %s31
      %s51 = sphi 0, %s51
      %s53 = sphi 0, %s51
      %s54 = sphi 0, %s53
      %s68 = sphi 0, %s54
      %s72 = sphi 0, %s72
      %s74 = sphi 0, %s72
      %s75 = sphi 0, %s74
      %s89 = sphi 0, %s75
      %s93 = sphi 0, %s93
      %s95 = sphi 0, %s93
      %s96 = sphi 0, %s95
      %s110 = sphi 0, %s96
      %s114 = sphi 0, %s114
      %s116 = sphi 0, %s114
      %s117 = sphi 0, %s116
      %s131 = sphi 0, %s117
      %s137 = sphi 0, %s139
      %s140 = sphi 0, %s137
      %s141 = sphi 0, %s140
      %s157 = sphi 0, %s141
    $region4: #{tpu_custom_call.1} parent=1 // loop_header_branch
      %20 = sbr.rel (%p18) target = $region8
    $region5: #{tpu_custom_call.1} parent=1 // loop_body
      %s22 = ssub.s32 %s17, 1
      %s23 = ssub.s32 %s17, 2
      %s24 = sadd.s32 %s17, 1
      %s25 = ssub.s32 %s17, %s24
      %p26 = scmp.eq.s32.totalorder %s25, 0
      %s28 = sadd.s32 %s27, 1
      %s29 = scalar_select %p26, %s27, %s28
      %p32 = pneg %p26
      %p33 = scmp.eq.s32.totalorder %s17, 1
      %p34 = por %p32, %p33
      %p35 = scmp.ne.s32.totalorder %s27, %s30
      %p36 = scmp.eq.s32.totalorder %s17, 0
      %p37 = por %p35, %p36
      %p38 = scmp.ne.s32.totalorder %s27, %s30
      %p39 = scmp.eq.s32.totalorder %s22, 1
      %p40 = por %p38, %p39
      %p41 = scmp.ne.s32.totalorder %s30, %s31
      %p42 = scmp.eq.s32.totalorder %s22, 0
      %p43 = por %p41, %p42
      %p44 = scmp.ne.s32.totalorder %s30, %s31
      %p45 = scmp.eq.s32.totalorder %s23, 1
      %p46 = por %p44, %p45
      %p48 = scmp.ne.s32.totalorder %s31, %s47
      %p49 = scmp.eq.s32.totalorder %s23, 0
      %p50 = por %p48, %p49
      %s52 = sadd.s32 %s51, 1
      %p55 = scmp.eq.s32.totalorder %s17, 1
      %p56 = scmp.ne.s32.totalorder %s51, %s53
      %p57 = scmp.eq.s32.totalorder %s17, 0
      %p58 = por %p56, %p57
      %p59 = scmp.ne.s32.totalorder %s51, %s53
      %p60 = scmp.eq.s32.totalorder %s22, 1
      %p61 = por %p59, %p60
      %p62 = scmp.ne.s32.totalorder %s53, %s54
      %p63 = scmp.eq.s32.totalorder %s22, 0
      %p64 = por %p62, %p63
      %p65 = scmp.ne.s32.totalorder %s53, %s54
      %p66 = scmp.eq.s32.totalorder %s23, 1
      %p67 = por %p65, %p66
      %p69 = scmp.ne.s32.totalorder %s54, %s68
      %p70 = scmp.eq.s32.totalorder %s23, 0
      %p71 = por %p69, %p70
      %s73 = sadd.s32 %s72, 1
      %p76 = scmp.eq.s32.totalorder %s17, 1
      %p77 = scmp.ne.s32.totalorder %s72, %s74
      %p78 = scmp.eq.s32.totalorder %s17, 0
      %p79 = por %p77, %p78
      %p80 = scmp.ne.s32.totalorder %s72, %s74
      %p81 = scmp.eq.s32.totalorder %s22, 1
      %p82 = por %p80, %p81
      %p83 = scmp.ne.s32.totalorder %s74, %s75
      %p84 = scmp.eq.s32.totalorder %s22, 0
      %p85 = por %p83, %p84
      %p86 = scmp.ne.s32.totalorder %s74, %s75
      %p87 = scmp.eq.s32.totalorder %s23, 1
      %p88 = por %p86, %p87
      %p90 = scmp.ne.s32.totalorder %s75, %s89
      %p91 = scmp.eq.s32.totalorder %s23, 0
      %p92 = por %p90, %p91
      %s94 = sadd.s32 %s93, 1
      %p97 = scmp.eq.s32.totalorder %s17, 1
      %p98 = scmp.ne.s32.totalorder %s93, %s95
      %p99 = scmp.eq.s32.totalorder %s17, 0
      %p100 = por %p98, %p99
      %p101 = scmp.ne.s32.totalorder %s93, %s95
      %p102 = scmp.eq.s32.totalorder %s22, 1
      %p103 = por %p101, %p102
      %p104 = scmp.ne.s32.totalorder %s95, %s96
      %p105 = scmp.eq.s32.totalorder %s22, 0
      %p106 = por %p104, %p105
      %p107 = scmp.ne.s32.totalorder %s95, %s96
      %p108 = scmp.eq.s32.totalorder %s23, 1
      %p109 = por %p107, %p108
      %p111 = scmp.ne.s32.totalorder %s96, %s110
      %p112 = scmp.eq.s32.totalorder %s23, 0
      %p113 = por %p111, %p112
      %s115 = sadd.s32 %s114, 1
      %p118 = scmp.eq.s32.totalorder %s17, 1
      %p119 = scmp.ne.s32.totalorder %s114, %s116
      %p120 = scmp.eq.s32.totalorder %s17, 0
      %p121 = por %p119, %p120
      %p122 = scmp.ne.s32.totalorder %s114, %s116
      %p123 = scmp.eq.s32.totalorder %s22, 1
      %p124 = por %p122, %p123
      %p125 = scmp.ne.s32.totalorder %s116, %s117
      %p126 = scmp.eq.s32.totalorder %s22, 0
      %p127 = por %p125, %p126
      %p128 = scmp.ne.s32.totalorder %s116, %s117
      %p129 = scmp.eq.s32.totalorder %s23, 1
      %p130 = por %p128, %p129
      %p132 = scmp.ne.s32.totalorder %s117, %s131
      %p133 = scmp.eq.s32.totalorder %s23, 0
      %p134 = por %p132, %p133
      %s135 = ssub.s32 %s17, %s24
      %p136 = scmp.eq.s32.totalorder %s135, 0
      %s138 = sadd.s32 %s137, 1
      %s139 = scalar_select %p136, %s137, %s138
      %p142 = pneg %p136
      %p143 = scmp.eq.s32.totalorder %s17, 1
      %p144 = por %p142, %p143
      %p145 = scmp.ne.s32.totalorder %s137, %s140
      %p146 = scmp.eq.s32.totalorder %s17, 0
      %p147 = por %p145, %p146
      %p148 = scmp.ne.s32.totalorder %s137, %s140
      %p149 = scmp.eq.s32.totalorder %s22, 1
      %p150 = por %p148, %p149
      %p151 = scmp.ne.s32.totalorder %s140, %s141
      %p152 = scmp.eq.s32.totalorder %s22, 0
      %p153 = por %p151, %p152
      %p154 = scmp.ne.s32.totalorder %s140, %s141
      %p155 = scmp.eq.s32.totalorder %s23, 1
      %p156 = por %p154, %p155
      %p158 = scmp.ne.s32.totalorder %s141, %s157
      %p159 = scmp.eq.s32.totalorder %s23, 0
      %p160 = por %p158, %p159
      %p161 = scmp.le.s32.totalorder 1, %s17
      %p162 = scmp.lt.s32.totalorder %s17, 3
      %p163 = pnand %p161, %p162
      %p164 = pneg %p163
      // Predicated region
      $region9: #{tpu_custom_call.1} parent=5 // pred_check
        _
      $region10: #{tpu_custom_call.1} parent=5 // pred_check_branch
        %166 = sbr.rel (%p163) target = $region12
      $region11: #{tpu_custom_call.1} parent=5 // pred_region
        %s167 = ssub.s32 %s17, 1
        // Predicated region
        $region13: #{tpu_custom_call.1} parent=11 // pred_check
          %p168 = pneg %p64
        $region14: #{tpu_custom_call.1} parent=11 // pred_check_branch
          %170 = sbr.rel (%p168) target = $region16
        $region15: #{tpu_custom_call.1} parent=11 // pred_region
          _
        $region16: #{tpu_custom_call.1} parent=11 // pred_fallthru
          _
        // Predicated region
        $region17: #{tpu_custom_call.1} parent=11 // pred_check
          %p171 = pneg %p85
        $region18: #{tpu_custom_call.1} parent=11 // pred_check_branch
          %173 = sbr.rel (%p171) target = $region20
        $region19: #{tpu_custom_call.1} parent=11 // pred_region
          _
        $region20: #{tpu_custom_call.1} parent=11 // pred_fallthru
          _
        // Predicated region
        $region21: #{tpu_custom_call.1} parent=11 // pred_check
          %p174 = pneg %p106
        $region22: #{tpu_custom_call.1} parent=11 // pred_check_branch
          %176 = sbr.rel (%p174) target = $region24
        $region23: #{tpu_custom_call.1} parent=11 // pred_region
          _
        $region24: #{tpu_custom_call.1} parent=11 // pred_fallthru
          _
        // Predicated region
        $region25: #{tpu_custom_call.1} parent=11 // pred_check
          %p177 = pneg %p127
        $region26: #{tpu_custom_call.1} parent=11 // pred_check_branch
          %179 = sbr.rel (%p177) target = $region28
        $region27: #{tpu_custom_call.1} parent=11 // pred_region
          _
        $region28: #{tpu_custom_call.1} parent=11 // pred_fallthru
          _
      $region12: #{tpu_custom_call.1} parent=5 // pred_fallthru
        _
      %p180 = scmp.lt.s32.totalorder %s17, 2
      // Predicated region
      $region29: #{tpu_custom_call.1} parent=5 // pred_check
        %p181 = pneg %p180
      $region30: #{tpu_custom_call.1} parent=5 // pred_check_branch
        %183 = sbr.rel (%p181) target = $region32
      $region31: #{tpu_custom_call.1} parent=5 // pred_region
        // Predicated region
        $region33: #{tpu_custom_call.1} parent=31 // pred_check
          %p184 = pneg %p37
        $region34: #{tpu_custom_call.1} parent=31 // pred_check_branch
          %186 = sbr.rel (%p184) target = $region36
        $region35: #{tpu_custom_call.1} parent=31 // pred_region
          %s187 = sand.u32 %s27, 1
          %s188 = scalar_lea.sflag [#allocation3], %s187
          %s189 = sand.u32 %s27, 1
          %s190 = smul.addr %s189, 128
          %s191 = scalar_lea.vmem [#allocation2], %s190
          %s192 = smul.u32 2, %s17
          %s194 = ssub.s32 2048, 2048
          %195 = vsyncadd %s188, %s194
          %s196 = smul.addr %s192, 8
          %s197 = smul.addr %s196, 128
          %s198 = scalar_lea.hbm %s0, %s197
          %s199 = sshll.u32 %s191, 4
          %s200 = int_to_ptr.vmem [resolvable:$true] %s199
          %205 = dma.hbm_to_vmem [thread:$0]  %s198, 2048, %s200, %s188, 256, 256, 16
        $region36: #{tpu_custom_call.1} parent=31 // pred_fallthru
          _
      $region32: #{tpu_custom_call.1} parent=5 // pred_fallthru
        _
      %p206 = scmp.le.s32.totalorder 1, %s17
      %p207 = scmp.lt.s32.totalorder %s17, 3
      %p208 = pnand %p206, %p207
      %p209 = pneg %p208
      // Predicated region
      $region37: #{tpu_custom_call.1} parent=5 // pred_check
        _
      $region38: #{tpu_custom_call.1} parent=5 // pred_check_branch
        %211 = sbr.rel (%p208) target = $region40
      $region39: #{tpu_custom_call.1} parent=5 // pred_region
        %s212 = ssub.s32 %s17, 1
        %s213 = sand.u32 %s30, 1
        %s214 = scalar_lea.sflag [#allocation3], %s213
        %s215 = sand.u32 %s30, 1
        %s216 = smul.addr %s215, 128
        %s217 = scalar_lea.vmem [#allocation2], %s216
        // Predicated region
        $region41: #{tpu_custom_call.1} parent=39 // pred_check
          %p218 = pneg %p43
        $region42: #{tpu_custom_call.1} parent=39 // pred_check_branch
          %220 = sbr.rel (%p218) target = $region44
        $region43: #{tpu_custom_call.1} parent=39 // pred_region
          %221 = dma.done %s214, 2048
        $region44: #{tpu_custom_call.1} parent=39 // pred_fallthru
          _
        %s222 = sand.u32 %s30, 1
        %s223 = scalar_lea.sflag [#allocation3], %s222
        %s224 = sand.u32 %s30, 1
        %s225 = smul.addr %s224, 128
        %s226 = scalar_lea.vmem [#allocation2], %s225
        %p227 = pneg %p43
        %p228 = pneg %p40
        %p229 = pneg %p64
        %p230 = pneg %p61
        %p231 = pneg %p85
        %p232 = pneg %p82
        %p233 = pneg %p106
        %p234 = pneg %p103
        %p235 = pneg %p127
        %p236 = pneg %p124
        %p237 = pneg %p153
        %p238 = pneg %p150
        %s239 = sand.u32 %s140, 1
        %s240 = scalar_lea.sflag [#allocation4], %s239
        %s241 = sand.u32 %s140, 1
        %s242 = smul.addr %s241, 128
        %s243 = scalar_lea.vmem [#allocation5], %s242
        %s244 = smul.u32 2, %s22
        %s245 = smul.u32 2, %s22
        %v246 = vld [vmem:[%s217] sm:$0xff]
        %v247 = vld [vmem:[%s217 + $0x8] sm:$0xff]
        %v248 = vld [vmem:[%s217 + $0x10] sm:$0xff]
        %v249 = vld [vmem:[%s217 + $0x18] sm:$0xff]
        %v250 = vld [vmem:[%s217 + $0x20] sm:$0xff]
        %v251 = vld [vmem:[%s217 + $0x28] sm:$0xff]
        %v252 = vld [vmem:[%s217 + $0x30] sm:$0xff]
        %v253 = vld [vmem:[%s217 + $0x38] sm:$0xff]
        %v254 = vld [vmem:[%s217 + $0x40] sm:$0xff]
        %v255 = vld [vmem:[%s217 + $0x48] sm:$0xff]
        %v256 = vld [vmem:[%s217 + $0x50] sm:$0xff]
        %v257 = vld [vmem:[%s217 + $0x58] sm:$0xff]
        %v258 = vld [vmem:[%s217 + $0x60] sm:$0xff]
        %v259 = vld [vmem:[%s217 + $0x68] sm:$0xff]
        %v260 = vld [vmem:[%s217 + $0x70] sm:$0xff]
        %v261 = vld [vmem:[%s217 + $0x78] sm:$0xff]
        %v262 = vadd.f32 %v246, %v247
        %263 = vadd.xlane.f32.xlu0 %v262
        %v264 = vpop.xlane.xlu0 %263
        %v265 = vadd.f32 %v248, %v249
        %266 = vadd.xlane.f32.xlu0 %v265
        %v267 = vpop.xlane.xlu0 %266
        %v268 = vadd.f32 %v250, %v251
        %269 = vadd.xlane.f32.xlu0 %v268
        %v270 = vpop.xlane.xlu0 %269
        %v271 = vadd.f32 %v252, %v253
        %272 = vadd.xlane.f32.xlu0 %v271
        %v273 = vpop.xlane.xlu0 %272
        %v274 = vadd.f32 %v254, %v255
        %275 = vadd.xlane.f32.xlu0 %v274
        %v276 = vpop.xlane.xlu0 %275
        %v277 = vadd.f32 %v256, %v257
        %278 = vadd.xlane.f32.xlu0 %v277
        %v279 = vpop.xlane.xlu0 %278
        %v280 = vadd.f32 %v258, %v259
        %281 = vadd.xlane.f32.xlu0 %v280
        %v282 = vpop.xlane.xlu0 %281
        %v283 = vadd.f32 %v260, %v261
        %284 = vadd.xlane.f32.xlu0 %v283
        %v285 = vpop.xlane.xlu0 %284
        %v286 = vmul.f32 %v264, 0.00390625
        %v287 = vmul.f32 %v267, 0.00390625
        %v288 = vmul.f32 %v270, 0.00390625
        %v289 = vmul.f32 %v273, 0.00390625
        %v290 = vmul.f32 %v276, 0.00390625
        %v291 = vmul.f32 %v279, 0.00390625
        %v292 = vmul.f32 %v282, 0.00390625
        %v293 = vmul.f32 %v285, 0.00390625
        %v294 = vld [vmem:[%s1] sm:$0xff]
        %v295 = vld [vmem:[%s1 + $0x8] sm:$0xff]
        %v296 = vld [vmem:[%s1 + $0x10] sm:$0xff]
        %v297 = vld [vmem:[%s1 + $0x18] sm:$0xff]
        %v298 = vld [vmem:[%s2] sm:$0x1]
        %v300 = vlaneseq
        %v301 = vshrl.u32 %v300, 7
        %v302 = vsub.s32 0, %v301
        %v303 = vrot.slane %v298, %v302
        %v313 = vlaneseq
        %v314 = vand.u32 %v313, 127
        %v315 = vlaneseq
        %v316 = vshrl.u32 %v315, 7
        %v317 = vsub.s32 %v314, %v316
        %v318 = vrot.slane %v286, %v317
        %v319 = vadd.s32 %v314, 4294967288
        %v320 = vlaneseq
        %v321 = vshrl.u32 %v320, 7
        %v322 = vsub.s32 %v319, %v321
        %v323 = vrot.slane %v287, %v322
        %vm324 = vcmask 130112
        %v325 = vsel %vm324, %v323, %v318
        %v326 = vadd.s32 %v314, 4294967280
        %v327 = vlaneseq
        %v328 = vshrl.u32 %v327, 7
        %v329 = vsub.s32 %v326, %v328
        %v330 = vrot.slane %v288, %v329
        %vm331 = vcmask 195712
        %v332 = vsel %vm331, %v330, %v325
        %v333 = vadd.s32 %v314, 4294967272
        %v334 = vlaneseq
        %v335 = vshrl.u32 %v334, 7
        %v336 = vsub.s32 %v333, %v335
        %v337 = vrot.slane %v289, %v336
        %vm338 = vcmask 261312
        %v339 = vsel %vm338, %v337, %v332
        %v340 = vlaneseq
        %v341 = vshrl.u32 %v340, 7
        %v342 = vsub.s32 %v314, %v341
        %v343 = vrot.slane %v290, %v342
        %v344 = vlaneseq
        %v345 = vshrl.u32 %v344, 7
        %v346 = vsub.s32 %v319, %v345
        %v347 = vrot.slane %v291, %v346
        %v348 = vsel %vm324, %v347, %v343
        %v349 = vlaneseq
        %v350 = vshrl.u32 %v349, 7
        %v351 = vsub.s32 %v326, %v350
        %v352 = vrot.slane %v292, %v351
        %v353 = vsel %vm331, %v352, %v348
        %v354 = vlaneseq
        %v355 = vshrl.u32 %v354, 7
        %v356 = vsub.s32 %v333, %v355
        %v357 = vrot.slane %v293, %v356
        %v358 = vsel %vm338, %v357, %v353
        %vm359 = vcmask 1041409
        %v360 = vsel %vm359, %v358, %v339
        %vm361 = vcmask 261120
        %v362 = vsel %vm361, %v360, 0
        %364 = vmatprep.subr.mxu0 0.0
        %365 = vmatpush1.msra.mxu0 %v294
        %366 = vmatprep.subr.mxu0 0.0
        %367 = vmatpush1.msra.mxu0 %v295
        %368 = vmatprep.subr.mxu0 0.0
        %369 = vmatpush1.msra.mxu0 %v296
        %370 = vmatprep.subr.mxu0 0.0
        %371 = vmatpush1.msra.mxu0 %v297
        %372 = vmatprep.subr.mxu0 0.0
        %373 = vmatpush1.msra.mxu0 0.0
        %374 = vmatprep.subr.mxu0 0.0
        %375 = vmatpush1.msra.mxu0 0.0
        %376 = vmatprep.subr.mxu0 0.0
        %377 = vmatpush1.msra.mxu0 0.0
        %378 = vmatprep.subr.mxu0 0.0
        %379 = vmatpush1.msra.mxu0 0.0
        %380 = vmatprep.subr.mxu0 0.0
        %381 = vmatpush1.msra.mxu0 0.0
        %382 = vmatprep.subr.mxu0 0.0
        %383 = vmatpush1.msra.mxu0 0.0
        %384 = vmatprep.subr.mxu0 0.0
        %385 = vmatpush1.msra.mxu0 0.0
        %386 = vmatprep.subr.mxu0 0.0
        %387 = vmatpush1.msra.mxu0 0.0
        %388 = vmatprep.subr.mxu0 0.0
        %389 = vmatpush1.msra.mxu0 0.0
        %390 = vmatprep.subr.mxu0 0.0
        %391 = vmatpush1.msra.mxu0 0.0
        %392 = vmatprep.subr.mxu0 0.0
        %393 = vmatpush1.msra.mxu0 0.0
        %394 = vmatprep.subr.mxu0 0.0
        %395 = vmatpush1.msra.mxu0 0.0
        %396 = vmatprep.subr.mxu0 0.0
        %397 = vmatpush1.msra.mxu0 0.0
        %398 = vmatprep.subr.mxu0 0.0
        %399 = vmatpush1.msra.mxu0 0.0
        %400 = vmatprep.subr.mxu0 0.0
        %401 = vmatpush1.msra.mxu0 0.0
        %402 = vmatprep.subr.mxu0 0.0
        %403 = vmatpush1.msra.mxu0 0.0
        %404 = vmatprep.subr.mxu0 0.0
        %405 = vmatpush1.msra.mxu0 0.0
        %406 = vmatprep.subr.mxu0 0.0
        %407 = vmatpush1.msra.mxu0 0.0
        %408 = vmatprep.subr.mxu0 0.0
        %409 = vmatpush1.msra.mxu0 0.0
        %410 = vmatprep.subr.mxu0 0.0
        %411 = vmatpush1.msra.mxu0 0.0
        %412 = vmatprep.subr.mxu0 0.0
        %413 = vmatpush1.msra.mxu0 0.0
        %414 = vmatprep.subr.mxu0 0.0
        %415 = vmatpush1.msra.mxu0 0.0
        %416 = vmatprep.subr.mxu0 0.0
        %417 = vmatpush1.msra.mxu0 0.0
        %418 = vmatprep.subr.mxu0 0.0
        %419 = vmatpush1.msra.mxu0 0.0
        %420 = vmatprep.subr.mxu0 0.0
        %421 = vmatpush1.msra.mxu0 0.0
        %422 = vmatprep.subr.mxu0 0.0
        %423 = vmatpush1.msra.mxu0 0.0
        %424 = vmatprep.subr.mxu0 0.0
        %425 = vmatpush1.msra.mxu0 0.0
        %426 = vmatprep.subr.mxu0 0.0
        %427 = vmatpush1.msra.mxu0 0.0
        %428 = vmatprep.mubr.f32.mxu0 0.0
        %429 = vmatmul.mubr.f32.gmra.mrb[0].mxu0 %v362
        %v430 = vpop.f32.mrb[0].mxu0
        %v431 = vadd.f32 %v303, %v430
        %v432 = vpop.f32.mrb[0].mxu0
        %433 = vdwg.mxu0
        %v434 = vmax.f32 %v431, 0.0
        %v435 = vmin.f32 %v434, 6.0
        %v436 = vld [vmem:[%s3] sm:$0xff]
        %v437 = vld [vmem:[%s4] sm:$0x1]
        %v439 = vlaneseq
        %v440 = vshrl.u32 %v439, 7
        %v441 = vsub.s32 0, %v440
        %v442 = vrot.slane %v437, %v441
        %vm444 = vcmask 64512
        %v446 = vsel %vm444, %v435, 0
        %448 = vmatprep.subr.mxu0 0.0
        %449 = vmatpush1.msra.mxu0 %v436
        %450 = vmatprep.subr.mxu0 0.0
        %451 = vmatpush1.msra.mxu0 0.0
        %452 = vmatprep.subr.mxu0 0.0
        %453 = vmatpush1.msra.mxu0 0.0
        %454 = vmatprep.subr.mxu0 0.0
        %455 = vmatpush1.msra.mxu0 0.0
        %456 = vmatprep.subr.mxu0 0.0
        %457 = vmatpush1.msra.mxu0 0.0
        %458 = vmatprep.subr.mxu0 0.0
        %459 = vmatpush1.msra.mxu0 0.0
        %460 = vmatprep.subr.mxu0 0.0
        %461 = vmatpush1.msra.mxu0 0.0
        %462 = vmatprep.subr.mxu0 0.0
        %463 = vmatpush1.msra.mxu0 0.0
        %464 = vmatprep.subr.mxu0 0.0
        %465 = vmatpush1.msra.mxu0 0.0
        %466 = vmatprep.subr.mxu0 0.0
        %467 = vmatpush1.msra.mxu0 0.0
        %468 = vmatprep.subr.mxu0 0.0
        %469 = vmatpush1.msra.mxu0 0.0
        %470 = vmatprep.subr.mxu0 0.0
        %471 = vmatpush1.msra.mxu0 0.0
        %472 = vmatprep.subr.mxu0 0.0
        %473 = vmatpush1.msra.mxu0 0.0
        %474 = vmatprep.subr.mxu0 0.0
        %475 = vmatpush1.msra.mxu0 0.0
        %476 = vmatprep.subr.mxu0 0.0
        %477 = vmatpush1.msra.mxu0 0.0
        %478 = vmatprep.subr.mxu0 0.0
        %479 = vmatpush1.msra.mxu0 0.0
        %480 = vmatprep.subr.mxu0 0.0
        %481 = vmatpush1.msra.mxu0 0.0
        %482 = vmatprep.subr.mxu0 0.0
        %483 = vmatpush1.msra.mxu0 0.0
        %484 = vmatprep.subr.mxu0 0.0
        %485 = vmatpush1.msra.mxu0 0.0
        %486 = vmatprep.subr.mxu0 0.0
        %487 = vmatpush1.msra.mxu0 0.0
        %488 = vmatprep.subr.mxu0 0.0
        %489 = vmatpush1.msra.mxu0 0.0
        %490 = vmatprep.subr.mxu0 0.0
        %491 = vmatpush1.msra.mxu0 0.0
        %492 = vmatprep.subr.mxu0 0.0
        %493 = vmatpush1.msra.mxu0 0.0
        %494 = vmatprep.subr.mxu0 0.0
        %495 = vmatpush1.msra.mxu0 0.0
        %496 = vmatprep.subr.mxu0 0.0
        %497 = vmatpush1.msra.mxu0 0.0
        %498 = vmatprep.subr.mxu0 0.0
        %499 = vmatpush1.msra.mxu0 0.0
        %500 = vmatprep.subr.mxu0 0.0
        %501 = vmatpush1.msra.mxu0 0.0
        %502 = vmatprep.subr.mxu0 0.0
        %503 = vmatpush1.msra.mxu0 0.0
        %504 = vmatprep.subr.mxu0 0.0
        %505 = vmatpush1.msra.mxu0 0.0
        %506 = vmatprep.subr.mxu0 0.0
        %507 = vmatpush1.msra.mxu0 0.0
        %508 = vmatprep.subr.mxu0 0.0
        %509 = vmatpush1.msra.mxu0 0.0
        %510 = vmatprep.subr.mxu0 0.0
        %511 = vmatpush1.msra.mxu0 0.0
        %512 = vmatprep.mubr.f32.mxu0 0.0
        %513 = vmatmul.mubr.f32.gmra.mrb[0].mxu0 %v446
        %v514 = vpop.f32.mrb[0].mxu0
        %v515 = vadd.f32 %v442, %v514
        %v516 = vpop.f32.mrb[0].mxu0
        %517 = vdwg.mxu0
        %v518 = vadd.f32 %v515, 3.0
        %v519 = vmax.f32 %v518, 0.0
        %v520 = vmin.f32 %v519, 6.0
        %v521 = vmul.f32 %v515, %v520
        %v522 = vmul.f32 %v521, 0.16666667
        %v523 = vlaneseq
        %v524 = vshrl.u32 %v523, 7
        %v525 = vsub.s32 0, %v524
        %v526 = vrot.slane %v522, %v525
        %528 = vbcast.lane.b32.xlu0 %v526, 256
        %v529 = vpop.permute.xlu0 %528
        %s531 = sor.u32 256, 8
        %532 = vbcast.lane.b32.xlu0 %v526, %s531
        %v533 = vpop.permute.xlu0 %532
        %s535 = sor.u32 256, 16
        %536 = vbcast.lane.b32.xlu0 %v526, %s535
        %v537 = vpop.permute.xlu0 %536
        %s539 = sor.u32 256, 24
        %540 = vbcast.lane.b32.xlu0 %v526, %s539
        %v541 = vpop.permute.xlu0 %540
        %v542 = vlaneseq
        %v543 = vshrl.u32 %v542, 7
        %v544 = vsub.s32 1, %v543
        %v545 = vrot.slane %v522, %v544
        %547 = vbcast.lane.b32.xlu0 %v545, 256
        %v548 = vpop.permute.xlu0 %547
        %s550 = sor.u32 256, 8
        %551 = vbcast.lane.b32.xlu0 %v545, %s550
        %v552 = vpop.permute.xlu0 %551
        %s554 = sor.u32 256, 16
        %555 = vbcast.lane.b32.xlu0 %v545, %s554
        %v556 = vpop.permute.xlu0 %555
        %s558 = sor.u32 256, 24
        %559 = vbcast.lane.b32.xlu0 %v545, %s558
        %v560 = vpop.permute.xlu0 %559
        %v561 = vmul.f32 %v246, %v529
        %v562 = vmul.f32 %v247, %v529
        %v563 = vmul.f32 %v248, %v533
        %v564 = vmul.f32 %v249, %v533
        %v565 = vmul.f32 %v250, %v537
        %v566 = vmul.f32 %v251, %v537
        %v567 = vmul.f32 %v252, %v541
        %v568 = vmul.f32 %v253, %v541
        %v569 = vmul.f32 %v254, %v548
        %v570 = vmul.f32 %v255, %v548
        %v571 = vmul.f32 %v256, %v552
        %v572 = vmul.f32 %v257, %v552
        %v573 = vmul.f32 %v258, %v556
        %v574 = vmul.f32 %v259, %v556
        %v575 = vmul.f32 %v260, %v560
        %v576 = vmul.f32 %v261, %v560
        %577 = vst [vmem:[%s243] sm:$0xff] %v561
        %578 = vst [vmem:[%s243 + $0x8] sm:$0xff] %v562
        %579 = vst [vmem:[%s243 + $0x10] sm:$0xff] %v563
        %580 = vst [vmem:[%s243 + $0x18] sm:$0xff] %v564
        %581 = vst [vmem:[%s243 + $0x20] sm:$0xff] %v565
        %582 = vst [vmem:[%s243 + $0x28] sm:$0xff] %v566
        %583 = vst [vmem:[%s243 + $0x30] sm:$0xff] %v567
        %584 = vst [vmem:[%s243 + $0x38] sm:$0xff] %v568
        %585 = vst [vmem:[%s243 + $0x40] sm:$0xff] %v569
        %586 = vst [vmem:[%s243 + $0x48] sm:$0xff] %v570
        %587 = vst [vmem:[%s243 + $0x50] sm:$0xff] %v571
        %588 = vst [vmem:[%s243 + $0x58] sm:$0xff] %v572
        %589 = vst [vmem:[%s243 + $0x60] sm:$0xff] %v573
        %590 = vst [vmem:[%s243 + $0x68] sm:$0xff] %v574
        %591 = vst [vmem:[%s243 + $0x70] sm:$0xff] %v575
        %592 = vst [vmem:[%s243 + $0x78] sm:$0xff] %v576
        %s593 = sand.u32 %s140, 1
        %s594 = scalar_lea.sflag [#allocation4], %s593
        %s595 = sand.u32 %s140, 1
        %s596 = smul.addr %s595, 128
        %s597 = scalar_lea.vmem [#allocation5], %s596
        // Predicated region
        $region45: #{tpu_custom_call.1} parent=39 // pred_check
          %p598 = pneg %p150
        $region46: #{tpu_custom_call.1} parent=39 // pred_check_branch
          %600 = sbr.rel (%p598) target = $region48
        $region47: #{tpu_custom_call.1} parent=39 // pred_region
          %s601 = smul.u32 2, %s22
          %s603 = ssub.s32 2048, 2048
          %604 = vsyncadd %s594, %s603
          %s605 = smul.addr %s601, 8
          %s606 = smul.addr %s605, 128
          %s607 = scalar_lea.hbm %s5, %s606
          %s608 = sshll.u32 %s597, 4
          %s609 = int_to_ptr.vmem [resolvable:$true] %s608
          %614 = dma.vmem_to_hbm [thread:$0]  %s609, 2048, %s607, %s594, 256, 256, 16
        $region48: #{tpu_custom_call.1} parent=39 // pred_fallthru
          _
      $region40: #{tpu_custom_call.1} parent=5 // pred_fallthru
        _
      %p615 = scmp.le.s32.totalorder 2, %s17
      // Predicated region
      $region49: #{tpu_custom_call.1} parent=5 // pred_check
        %p616 = pneg %p615
      $region50: #{tpu_custom_call.1} parent=5 // pred_check_branch
        %618 = sbr.rel (%p616) target = $region52
      $region51: #{tpu_custom_call.1} parent=5 // pred_region
        %s619 = ssub.s32 %s17, 2
        // Predicated region
        $region53: #{tpu_custom_call.1} parent=51 // pred_check
          %p620 = pneg %p156
        $region54: #{tpu_custom_call.1} parent=51 // pred_check_branch
          %622 = sbr.rel (%p620) target = $region56
        $region55: #{tpu_custom_call.1} parent=51 // pred_region
          %s623 = sand.u32 %s141, 1
          %s624 = scalar_lea.sflag [#allocation4], %s623
          %s625 = sand.u32 %s141, 1
          %s626 = smul.addr %s625, 128
          %s627 = scalar_lea.vmem [#allocation5], %s626
          %628 = dma.done %s624, 2048
        $region56: #{tpu_custom_call.1} parent=51 // pred_fallthru
          _
      $region52: #{tpu_custom_call.1} parent=5 // pred_fallthru
        _
    $region6: #{tpu_custom_call.1} parent=1 // loop_footer
      %s21 = sadd.s32 1, %s17
    $region7: #{tpu_custom_call.1} parent=1 // loop_footer_branch
      %16 = sbr.rel target = $region3
    $region8: #{tpu_custom_call.1} parent=1 // loop_exit
      _
    %629 = vsyncpa [#allocation3], 1
    %s630 = scalar_lea.sflag [#allocation3], 1
    %631 = vsyncpa %s630, 1
    %632 = vsyncpa [#allocation4], 1
    %s633 = scalar_lea.sflag [#allocation4], 1
    %634 = vsyncpa %s633, 1

</llo_original>
